<compile_context>
chip_gen: v6e
topology: v6e:2x2x1
jax: 0.10.0
libtpu: 0.0.40
codegen_flags: <defaults>
</compile_context>

<pallas_src>
import functools

import jax
import jax.numpy as jnp
from jax.experimental import pallas as pl
from jax.experimental.pallas import tpu as pltpu

K = 9              # umbrella neighbors (= number of umbrella triangles per point)
IN_CHANNEL = 10    # 3 polar + 3 normal + 1 pos + 3 center
OUT_CHANNEL = 32
BN_EPS = 1e-5


# ----------------------------- geometry glue (plain JAX) -----------------------------

def _fixed_rotate(xyz):
    rot_mat = jnp.array([[0.5, -0.5, 0.7071],
                         [0.7071, 0.7071, 0.0],
                         [-0.5, 0.5, 0.7071]], dtype=jnp.float32)
    return xyz @ rot_mat


def xyz2sphere(xyz, normalize=True):
    rho = jnp.sqrt(jnp.sum(xyz ** 2, axis=-1, keepdims=True))
    safe_rho = jnp.where(rho == 0.0, 1.0, rho)
    theta = jnp.arccos(jnp.clip(xyz[..., 2:3] / safe_rho, -1.0, 1.0))
    theta = jnp.where(rho == 0.0, 0.0, theta)
    phi = jnp.arctan2(xyz[..., 1:2], xyz[..., 0:1])
    if normalize:
        theta = theta / jnp.pi
        phi = phi / (2.0 * jnp.pi) + 0.5
    return jnp.concatenate([rho, theta, phi], axis=-1)


def knn_query(k, xyz, new_xyz, offset, new_offset):
    # TODO(synk): pointops.knnquery (segment-restricted KNN) + argsort/gather have no
    # clean Pallas equivalent (data-dependent sort/gather); for large point counts this
    # O(M*N) JAX path needs a segmented Pallas top-k kernel.
    n = xyz.shape[0]
    m = new_xyz.shape[0]
    seg_x = jnp.searchsorted(offset, jnp.arange(n), side="right")
    seg_q = jnp.searchsorted(new_offset, jnp.arange(m), side="right")
    x2 = jnp.sum(xyz * xyz, axis=-1)
    q2 = jnp.sum(new_xyz * new_xyz, axis=-1)
    d2 = q2[:, None] + x2[None, :] - 2.0 * (new_xyz @ xyz.T)       # MXU-friendly form
    d2 = jnp.where(seg_q[:, None] != seg_x[None, :], jnp.inf, d2)
    _, idx = jax.lax.top_k(-d2, k)      # ascending distance
    return idx


def group_by_umbrella_v2(xyz, new_xyz, offset, new_offset, k=9):
    idx = knn_query(k, xyz, new_xyz, offset, new_offset)               # [M, k]
    group_xyz = xyz[idx]                                               # [M, k, 3]
    group_xyz_norm = group_xyz - new_xyz[:, None, :]
    group_phi = xyz2sphere(_fixed_rotate(group_xyz_norm))[..., 2]
    sort_idx = jnp.argsort(group_phi, axis=-1)
    sorted_group_xyz = jnp.take_along_axis(
        group_xyz_norm, sort_idx[..., None], axis=1)[:, :, None, :]    # [M, k, 1, 3]
    sorted_group_xyz_roll = jnp.roll(sorted_group_xyz, -1, axis=-3)
    group_centroid = jnp.zeros_like(sorted_group_xyz)
    return jnp.concatenate(
        [group_centroid, sorted_group_xyz, sorted_group_xyz_roll], axis=-2)  # [M, k, 3, 3]


def cal_normal(group_xyz, offset, rand_key, random_inv=False, is_group=False):
    edge_vec1 = group_xyz[..., 1, :] - group_xyz[..., 0, :]
    edge_vec2 = group_xyz[..., 2, :] - group_xyz[..., 0, :]
    nor = jnp.cross(edge_vec1, edge_vec2)
    unit_nor = nor / jnp.linalg.norm(nor, axis=-1, keepdims=True)
    if not is_group:
        pos_mask = (unit_nor[..., 0] > 0).astype(jnp.float32) * 2.0 - 1.0
        unit_nor = unit_nor * pos_mask[..., None]
    else:
        pos_mask = (unit_nor[..., 0, 0] > 0).astype(jnp.float32) * 2.0 - 1.0
        unit_nor = unit_nor * pos_mask[:, None, None]
    if random_inv:
        seg_sign = jax.random.bernoulli(
            rand_key, 0.5, (offset.shape[0],)).astype(jnp.float32) * 2.0 - 1.0
        seg_id = jnp.searchsorted(offset, jnp.arange(unit_nor.shape[0]), side="right")
        point_sign = seg_sign[seg_id]
        if not is_group:
            unit_nor = unit_nor * point_sign[:, None]
        else:
            unit_nor = unit_nor * point_sign[:, None, None]
    return unit_nor


def cal_center(group_xyz):
    return jnp.mean(group_xyz, axis=-2)


def cal_const(normal, center, is_normalize=True):
    const = jnp.sum(normal * center, axis=-1, keepdims=True)
    return const / jnp.sqrt(3.0) if is_normalize else const


def check_nan_umb(normal, center, pos=None):
    mask = jnp.sum(jnp.isnan(normal), axis=-1) > 0                      # [N, G]
    mask_first = jnp.argmax((~mask).astype(jnp.int32), axis=-1)         # [N]

    def _fix(x):
        first = jnp.take_along_axis(x, mask_first[:, None, None], axis=1)
        return jnp.where(mask[..., None], first, x)

    normal = _fix(normal)
    center = _fix(center)
    if pos is not None:
        pos = _fix(pos)
        return normal, center, pos
    return normal, center


# ----------------------------- Pallas hot-path kernel -----------------------------

def _umbrella_mlp_kernel(feat_ref, w1t_ref, shift_ref, w2t_ref, b2_ref, out_ref,
                         *, num_groups, chunk):
    # feat_ref : (G, Cin, TN) bf16 -- channels-first, group-major point tile
    # w1t_ref  : (C, Cin)     bf16 -- BN-folded conv1 weight (transposed)
    # shift_ref: (C, 1)       f32  -- BN-folded conv1 bias
    # w2t_ref  : (C, C)       bf16 -- conv2 weight (transposed)
    # b2_ref   : (C, 1)       f32  -- G * conv2 bias
    # out_ref  : (C, TN)      f32  -- lane-dense output tile
    c, tn = out_ref.shape
    n_chunks = tn // chunk

    w1t = w1t_ref[...]
    w2t = w2t_ref[...]
    # Hoist (C,1)->(C,chunk) broadcasts out of the group/chunk loops (JAX does not CSE them).
    shift_b = jnp.broadcast_to(shift_ref[...], (c, chunk))
    b2_b = jnp.broadcast_to(b2_ref[...], (c, chunk))

    # Static chunk loop over lane blocks: keeps the (C, chunk) f32 accumulator
    # register-resident instead of round-tripping a (C, tn) accumulator through VMEM.
    for ci in range(n_chunks):
        col = ci * chunk
        hsum = jnp.zeros((c, chunk), jnp.float32)
        for g in range(num_groups):
            h = jnp.dot(w1t, feat_ref[g, :, col:col + chunk],
                        preferred_element_type=jnp.float32)        # MXU, (C, chunk)
            hsum = hsum + jnp.maximum(h + shift_b, 0.0)            # folded BN + ReLU + group sum
        y = jnp.dot(w2t, hsum.astype(w2t.dtype),
                    preferred_element_type=jnp.float32)            # MXU, (C, chunk)
        out_ref[:, col:col + chunk] = y + b2_b                     # + G * b2


def umbrella_mlp_sum(feat_gcn, params, *, tn=4096, chunk=256):
    """Fused Conv1d(10->C,1) -> BatchNorm1d(train) -> ReLU -> Conv1d(C->C,1) -> sum over G.

    feat_gcn: [G, Cin, N] bfloat16 (channels-first, group-major). Returns [N, C] float32.
    Param convention: w1 (Cin, C), w2 (C, C) with (in, out) axes; b1/b2/gamma/beta (C,).
    """
    g, cin, n = feat_gcn.shape
    w1, b1 = params["w1"], params["b1"]
    gamma, beta = params["gamma"], params["beta"]
    w2, b2 = params["w2"], params["b2"]
    c = w1.shape[1]

    # --- BatchNorm1d train-mode statistics (exact moments of h = feat @ W1 + b1) computed
    # from the bf16 channels-first tensor with f32 accumulation and a *centered* Gram.
    cnt = jnp.float32(g * n)
    mu_f = jnp.mean(feat_gcn, axis=(0, 2), dtype=jnp.float32)                    # (Cin,)
    fc = feat_gcn - mu_f.astype(feat_gcn.dtype)[None, :, None]                   # bf16 centered
    cov_f = jnp.einsum("gcn,gdn->cd", fc, fc,
                       preferred_element_type=jnp.float32) / cnt                 # (Cin, Cin)
    mean_h = mu_f @ w1 + b1                                                       # (C,)
    var_h = jnp.maximum(jnp.einsum("ic,ij,jc->c", w1, cov_f, w1), 0.0)
    scale = gamma / jnp.sqrt(var_h + BN_EPS)
    shift = beta - mean_h * scale

    # --- fold BN into conv1 weight/bias ---
    w1t = (w1 * scale[None, :]).T.astype(jnp.bfloat16)            # (C, Cin)
    shiftf = (b1 * scale + shift).reshape(c, 1).astype(jnp.float32)
    w2t = w2.T.astype(jnp.bfloat16)                               # (C, C)
    b2sum = (jnp.float32(g) * b2).reshape(c, 1).astype(jnp.float32)

    # --- tile sizing: large lane tiles amortize per-grid-step overhead; clamp for small N ---
    assert chunk % 128 == 0
    tn_eff = max(chunk, min((tn // chunk) * chunk, pl.cdiv(n, chunk) * chunk))
    n_pad = pl.cdiv(n, tn_eff) * tn_eff
    feat_p = jnp.pad(feat_gcn, ((0, 0), (0, 0), (0, n_pad - n)))

    kernel = functools.partial(_umbrella_mlp_kernel, num_groups=g, chunk=chunk)

    out_cn = pl.pallas_call(
        kernel,
        out_shape=jax.ShapeDtypeStruct((c, n_pad), jnp.float32),
        grid_spec=pltpu.PrefetchScalarGridSpec(
            num_scalar_prefetch=0,
            grid=(n_pad // tn_eff,),
            in_specs=[
                pl.BlockSpec((g, cin, tn_eff), lambda i: (0, 0, i)),   # features (bf16)
                pl.BlockSpec((c, cin), lambda i: (0, 0)),              # W1' (BN folded)
                pl.BlockSpec((c, 1), lambda i: (0, 0)),                # folded bias
                pl.BlockSpec((c, c), lambda i: (0, 0)),                # W2^T
                pl.BlockSpec((c, 1), lambda i: (0, 0)),                # G * b2
            ],
            out_specs=pl.BlockSpec((c, tn_eff), lambda i: (0, i)),
        ),
        compiler_params=pltpu.CompilerParams(
            dimension_semantics=("parallel",)),
    )(feat_p, w1t, shiftf, w2t, b2sum)

    # (N, C) output is mandated by the module; the kernel keeps a lane-dense (C, N)
    # out_spec (unmasked full-lane stores) and the final transpose stays outside.
    return out_cn[:, :n].T


# ----------------------------- full forward -----------------------------

def umbrella_surface_constructor_forward(center, offset, params, rand_key,
                                         k=K, random_inv=True, tn=4096, chunk=256):
    group_xyz = group_by_umbrella_v2(center, center, offset, offset, k=k)   # [N, k, 3, 3]
    group_normal = cal_normal(group_xyz, offset, rand_key,
                              random_inv=random_inv, is_group=True)
    group_center = cal_center(group_xyz)
    group_polar = xyz2sphere(group_center)
    group_pos = cal_const(group_normal, group_center)
    group_normal, group_center, group_pos = check_nan_umb(group_normal, group_center, group_pos)

    # Build the MLP input channels-first / group-major (G, Cin, N) directly from the small
    # per-component arrays (no standalone [N, G, Cin] f32 tensor + separate relayout pass).
    def _gcn(x):  # [N, G, c] -> [G, c, N]
        return jnp.transpose(x, (1, 2, 0))

    feat_gcn = jnp.concatenate(
        [_gcn(group_polar), _gcn(group_normal), _gcn(group_pos), _gcn(group_center)],
        axis=1).astype(jnp.bfloat16)                                        # [G, 10, N]

    return umbrella_mlp_sum(feat_gcn, params, tn=tn, chunk=chunk)           # [N, C]


if __name__ == "__main__":
    key = jax.random.PRNGKey(0)
    k_pts, k_w1, k_b1, k_g, k_be, k_w2, k_b2, k_inv = jax.random.split(key, 8)

    N = 64
    center = jax.random.normal(k_pts, (N, 3), dtype=jnp.float32)   # point coords
    offset = jnp.array([32, 64], dtype=jnp.int32)                  # two batch segments

    params = {
        "w1": 0.1 * jax.random.normal(k_w1, (IN_CHANNEL, OUT_CHANNEL), jnp.float32),
        "b1": 0.1 * jax.random.normal(k_b1, (OUT_CHANNEL,), jnp.float32),
        "gamma": 1.0 + 0.1 * jax.random.normal(k_g, (OUT_CHANNEL,), jnp.float32),
        "beta": 0.1 * jax.random.normal(k_be, (OUT_CHANNEL,), jnp.float32),
        "w2": 0.1 * jax.random.normal(k_w2, (OUT_CHANNEL, OUT_CHANNEL), jnp.float32),
        "b2": 0.1 * jax.random.normal(k_b2, (OUT_CHANNEL,), jnp.float32),
    }

    out = umbrella_surface_constructor_forward(center, offset, params, k_inv)
    out = jax.block_until_ready(out)
    assert out.shape == (N, OUT_CHANNEL)
    assert not bool(jnp.any(jnp.isnan(out)))
    print("KERNEL_OK")
</pallas_src>

<mosaic_0001>
module attributes {stable_mosaic.version = 11 : i64} {
  func.func @_umbrella_mlp_kernel(%arg0: i32, %arg1: memref<9x10x256xbf16, #tpu.memory_space<vmem>>, %arg2: memref<32x10xbf16, #tpu.memory_space<vmem>>, %arg3: memref<32x1xf32, #tpu.memory_space<vmem>>, %arg4: memref<32x32xbf16, #tpu.memory_space<vmem>>, %arg5: memref<32x1xf32, #tpu.memory_space<vmem>>, %arg6: memref<32x256xf32, #tpu.memory_space<vmem>>) attributes {dimension_semantics = [#tpu.dimension_semantics<parallel>], iteration_bounds = array<i64: 1>, scalar_prefetch = 0 : i64, scratch_operands = 0 : i64, tpu.core_type = #tpu.core_type<tc>, window_params = [{transform_indices = @transform_0, window_bounds = array<i64: 9, 10, 256>}, {pipeline_mode = #tpu.pipeline_mode<synchronous>, transform_indices = @transform_1, window_bounds = array<i64: 32, 10>}, {pipeline_mode = #tpu.pipeline_mode<synchronous>, transform_indices = @transform_2, window_bounds = array<i64: 32, 1>}, {pipeline_mode = #tpu.pipeline_mode<synchronous>, transform_indices = @transform_3, window_bounds = array<i64: 32, 32>}, {pipeline_mode = #tpu.pipeline_mode<synchronous>, transform_indices = @transform_4, window_bounds = array<i64: 32, 1>}, {transform_indices = @transform_5, window_bounds = array<i64: 32, 256>}]} {
    %c0 = arith.constant 0 : index
    %c0_0 = arith.constant 0 : index
    %0 = vector.load %arg2[%c0, %c0_0] : memref<32x10xbf16, #tpu.memory_space<vmem>>, vector<32x10xbf16>
    %c0_1 = arith.constant 0 : index
    %c0_2 = arith.constant 0 : index
    %1 = vector.load %arg4[%c0_1, %c0_2] : memref<32x32xbf16, #tpu.memory_space<vmem>>, vector<32x32xbf16>
    %c0_3 = arith.constant 0 : index
    %c0_4 = arith.constant 0 : index
    %2 = vector.load %arg3[%c0_3, %c0_4] : memref<32x1xf32, #tpu.memory_space<vmem>>, vector<32x1xf32>
    %3 = vector.shape_cast %2 : vector<32x1xf32> to vector<32x1xf32>
    %4 = vector.broadcast %3 : vector<32x1xf32> to vector<32x256xf32>
    %c0_5 = arith.constant 0 : index
    %c0_6 = arith.constant 0 : index
    %5 = vector.load %arg5[%c0_5, %c0_6] : memref<32x1xf32, #tpu.memory_space<vmem>>, vector<32x1xf32>
    %6 = vector.shape_cast %5 : vector<32x1xf32> to vector<32x1xf32>
    %7 = vector.broadcast %6 : vector<32x1xf32> to vector<32x256xf32>
    %cst = arith.constant 0.000000e+00 : f32
    %8 = vector.broadcast %cst : f32 to vector<32x256xf32>
    %c0_7 = arith.constant 0 : index
    %c0_8 = arith.constant 0 : index
    %c0_9 = arith.constant 0 : index
    %9 = vector.load %arg1[%c0_7, %c0_8, %c0_9] : memref<9x10x256xbf16, #tpu.memory_space<vmem>>, vector<1x10x256xbf16>
    %10 = vector.shape_cast %9 : vector<1x10x256xbf16> to vector<10x256xbf16>
    %cst_10 = arith.constant dense<0.000000e+00> : vector<32x256xf32>
    %11 = tpu.matmul %0, %10, %cst_10 {dimension_numbers = #tpu.dot_dimension_numbers<[1], [0], [0], [1], [0, 0, 1, 1], [], []>} : vector<32x10xbf16>, vector<10x256xbf16>, vector<32x256xf32> -> vector<32x256xf32>
    %12 = arith.addf %11, %4 : vector<32x256xf32>
    %cst_11 = arith.constant 0.000000e+00 : f32
    %13 = vector.broadcast %cst_11 : f32 to vector<32x256xf32>
    %14 = arith.maximumf %12, %13 : vector<32x256xf32>
    %15 = arith.addf %8, %14 : vector<32x256xf32>
    %c1 = arith.constant 1 : index
    %c0_12 = arith.constant 0 : index
    %c0_13 = arith.constant 0 : index
    %16 = vector.load %arg1[%c1, %c0_12, %c0_13] : memref<9x10x256xbf16, #tpu.memory_space<vmem>>, vector<1x10x256xbf16>
    %17 = vector.shape_cast %16 : vector<1x10x256xbf16> to vector<10x256xbf16>
    %cst_14 = arith.constant dense<0.000000e+00> : vector<32x256xf32>
    %18 = tpu.matmul %0, %17, %cst_14 {dimension_numbers = #tpu.dot_dimension_numbers<[1], [0], [0], [1], [0, 0, 1, 1], [], []>} : vector<32x10xbf16>, vector<10x256xbf16>, vector<32x256xf32> -> vector<32x256xf32>
    %19 = arith.addf %18, %4 : vector<32x256xf32>
    %cst_15 = arith.constant 0.000000e+00 : f32
    %20 = vector.broadcast %cst_15 : f32 to vector<32x256xf32>
    %21 = arith.maximumf %19, %20 : vector<32x256xf32>
    %22 = arith.addf %15, %21 : vector<32x256xf32>
    %c2 = arith.constant 2 : index
    %c0_16 = arith.constant 0 : index
    %c0_17 = arith.constant 0 : index
    %23 = vector.load %arg1[%c2, %c0_16, %c0_17] : memref<9x10x256xbf16, #tpu.memory_space<vmem>>, vector<1x10x256xbf16>
    %24 = vector.shape_cast %23 : vector<1x10x256xbf16> to vector<10x256xbf16>
    %cst_18 = arith.constant dense<0.000000e+00> : vector<32x256xf32>
    %25 = tpu.matmul %0, %24, %cst_18 {dimension_numbers = #tpu.dot_dimension_numbers<[1], [0], [0], [1], [0, 0, 1, 1], [], []>} : vector<32x10xbf16>, vector<10x256xbf16>, vector<32x256xf32> -> vector<32x256xf32>
    %26 = arith.addf %25, %4 : vector<32x256xf32>
    %cst_19 = arith.constant 0.000000e+00 : f32
    %27 = vector.broadcast %cst_19 : f32 to vector<32x256xf32>
    %28 = arith.maximumf %26, %27 : vector<32x256xf32>
    %29 = arith.addf %22, %28 : vector<32x256xf32>
    %c3 = arith.constant 3 : index
    %c0_20 = arith.constant 0 : index
    %c0_21 = arith.constant 0 : index
    %30 = vector.load %arg1[%c3, %c0_20, %c0_21] : memref<9x10x256xbf16, #tpu.memory_space<vmem>>, vector<1x10x256xbf16>
    %31 = vector.shape_cast %30 : vector<1x10x256xbf16> to vector<10x256xbf16>
    %cst_22 = arith.constant dense<0.000000e+00> : vector<32x256xf32>
    %32 = tpu.matmul %0, %31, %cst_22 {dimension_numbers = #tpu.dot_dimension_numbers<[1], [0], [0], [1], [0, 0, 1, 1], [], []>} : vector<32x10xbf16>, vector<10x256xbf16>, vector<32x256xf32> -> vector<32x256xf32>
    %33 = arith.addf %32, %4 : vector<32x256xf32>
    %cst_23 = arith.constant 0.000000e+00 : f32
    %34 = vector.broadcast %cst_23 : f32 to vector<32x256xf32>
    %35 = arith.maximumf %33, %34 : vector<32x256xf32>
    %36 = arith.addf %29, %35 : vector<32x256xf32>
    %c4 = arith.constant 4 : index
    %c0_24 = arith.constant 0 : index
    %c0_25 = arith.constant 0 : index
    %37 = vector.load %arg1[%c4, %c0_24, %c0_25] : memref<9x10x256xbf16, #tpu.memory_space<vmem>>, vector<1x10x256xbf16>
    %38 = vector.shape_cast %37 : vector<1x10x256xbf16> to vector<10x256xbf16>
    %cst_26 = arith.constant dense<0.000000e+00> : vector<32x256xf32>
    %39 = tpu.matmul %0, %38, %cst_26 {dimension_numbers = #tpu.dot_dimension_numbers<[1], [0], [0], [1], [0, 0, 1, 1], [], []>} : vector<32x10xbf16>, vector<10x256xbf16>, vector<32x256xf32> -> vector<32x256xf32>
    %40 = arith.addf %39, %4 : vector<32x256xf32>
    %cst_27 = arith.constant 0.000000e+00 : f32
    %41 = vector.broadcast %cst_27 : f32 to vector<32x256xf32>
    %42 = arith.maximumf %40, %41 : vector<32x256xf32>
    %43 = arith.addf %36, %42 : vector<32x256xf32>
    %c5 = arith.constant 5 : index
    %c0_28 = arith.constant 0 : index
    %c0_29 = arith.constant 0 : index
    %44 = vector.load %arg1[%c5, %c0_28, %c0_29] : memref<9x10x256xbf16, #tpu.memory_space<vmem>>, vector<1x10x256xbf16>
    %45 = vector.shape_cast %44 : vector<1x10x256xbf16> to vector<10x256xbf16>
    %cst_30 = arith.constant dense<0.000000e+00> : vector<32x256xf32>
    %46 = tpu.matmul %0, %45, %cst_30 {dimension_numbers = #tpu.dot_dimension_numbers<[1], [0], [0], [1], [0, 0, 1, 1], [], []>} : vector<32x10xbf16>, vector<10x256xbf16>, vector<32x256xf32> -> vector<32x256xf32>
    %47 = arith.addf %46, %4 : vector<32x256xf32>
    %cst_31 = arith.constant 0.000000e+00 : f32
    %48 = vector.broadcast %cst_31 : f32 to vector<32x256xf32>
    %49 = arith.maximumf %47, %48 : vector<32x256xf32>
    %50 = arith.addf %43, %49 : vector<32x256xf32>
    %c6 = arith.constant 6 : index
    %c0_32 = arith.constant 0 : index
    %c0_33 = arith.constant 0 : index
    %51 = vector.load %arg1[%c6, %c0_32, %c0_33] : memref<9x10x256xbf16, #tpu.memory_space<vmem>>, vector<1x10x256xbf16>
    %52 = vector.shape_cast %51 : vector<1x10x256xbf16> to vector<10x256xbf16>
    %cst_34 = arith.constant dense<0.000000e+00> : vector<32x256xf32>
    %53 = tpu.matmul %0, %52, %cst_34 {dimension_numbers = #tpu.dot_dimension_numbers<[1], [0], [0], [1], [0, 0, 1, 1], [], []>} : vector<32x10xbf16>, vector<10x256xbf16>, vector<32x256xf32> -> vector<32x256xf32>
    %54 = arith.addf %53, %4 : vector<32x256xf32>
    %cst_35 = arith.constant 0.000000e+00 : f32
    %55 = vector.broadcast %cst_35 : f32 to vector<32x256xf32>
    %56 = arith.maximumf %54, %55 : vector<32x256xf32>
    %57 = arith.addf %50, %56 : vector<32x256xf32>
    %c7 = arith.constant 7 : index
    %c0_36 = arith.constant 0 : index
    %c0_37 = arith.constant 0 : index
    %58 = vector.load %arg1[%c7, %c0_36, %c0_37] : memref<9x10x256xbf16, #tpu.memory_space<vmem>>, vector<1x10x256xbf16>
    %59 = vector.shape_cast %58 : vector<1x10x256xbf16> to vector<10x256xbf16>
    %cst_38 = arith.constant dense<0.000000e+00> : vector<32x256xf32>
    %60 = tpu.matmul %0, %59, %cst_38 {dimension_numbers = #tpu.dot_dimension_numbers<[1], [0], [0], [1], [0, 0, 1, 1], [], []>} : vector<32x10xbf16>, vector<10x256xbf16>, vector<32x256xf32> -> vector<32x256xf32>
    %61 = arith.addf %60, %4 : vector<32x256xf32>
    %cst_39 = arith.constant 0.000000e+00 : f32
    %62 = vector.broadcast %cst_39 : f32 to vector<32x256xf32>
    %63 = arith.maximumf %61, %62 : vector<32x256xf32>
    %64 = arith.addf %57, %63 : vector<32x256xf32>
    %c8 = arith.constant 8 : index
    %c0_40 = arith.constant 0 : index
    %c0_41 = arith.constant 0 : index
    %65 = vector.load %arg1[%c8, %c0_40, %c0_41] : memref<9x10x256xbf16, #tpu.memory_space<vmem>>, vector<1x10x256xbf16>
    %66 = vector.shape_cast %65 : vector<1x10x256xbf16> to vector<10x256xbf16>
    %cst_42 = arith.constant dense<0.000000e+00> : vector<32x256xf32>
    %67 = tpu.matmul %0, %66, %cst_42 {dimension_numbers = #tpu.dot_dimension_numbers<[1], [0], [0], [1], [0, 0, 1, 1], [], []>} : vector<32x10xbf16>, vector<10x256xbf16>, vector<32x256xf32> -> vector<32x256xf32>
    %68 = arith.addf %67, %4 : vector<32x256xf32>
    %cst_43 = arith.constant 0.000000e+00 : f32
    %69 = vector.broadcast %cst_43 : f32 to vector<32x256xf32>
    %70 = arith.maximumf %68, %69 : vector<32x256xf32>
    %71 = arith.addf %64, %70 : vector<32x256xf32>
    %72 = arith.truncf %71 : vector<32x256xf32> to vector<32x256xbf16>
    %cst_44 = arith.constant dense<0.000000e+00> : vector<32x256xf32>
    %73 = tpu.matmul %1, %72, %cst_44 {dimension_numbers = #tpu.dot_dimension_numbers<[1], [0], [0], [1], [0, 0, 1, 1], [], []>} : vector<32x32xbf16>, vector<32x256xbf16>, vector<32x256xf32> -> vector<32x256xf32>
    %74 = arith.addf %73, %7 : vector<32x256xf32>
    %c0_45 = arith.constant 0 : index
    %c0_46 = arith.constant 0 : index
    %75 = vector.load %arg6[%c0_45, %c0_46] : memref<32x256xf32, #tpu.memory_space<vmem>>, vector<32x256xf32>
    tpu.vector_store %arg6[%c0_45, %c0_46], %74 {strides = array<i32>} : memref<32x256xf32, #tpu.memory_space<vmem>>, vector<32x256xf32>,
    return
  }
  func.func @transform_0(%arg0: i32) -> (i32, i32, i32) {
    %c0_i32 = arith.constant 0 : i32
    %c0_i32_0 = arith.constant 0 : i32
    %c0_i32_1 = arith.constant 0 : i32
    return %c0_i32, %c0_i32_0, %arg0 : i32, i32, i32
  }
  func.func @transform_1(%arg0: i32) -> (i32, i32) {
    %c0_i32 = arith.constant 0 : i32
    %c0_i32_0 = arith.constant 0 : i32
    %c0_i32_1 = arith.constant 0 : i32
    return %c0_i32, %c0_i32_0 : i32, i32
  }
  func.func @transform_2(%arg0: i32) -> (i32, i32) {
    %c0_i32 = arith.constant 0 : i32
    %c0_i32_0 = arith.constant 0 : i32
    %c0_i32_1 = arith.constant 0 : i32
    return %c0_i32, %c0_i32_0 : i32, i32
  }
  func.func @transform_3(%arg0: i32) -> (i32, i32) {
    %c0_i32 = arith.constant 0 : i32
    %c0_i32_0 = arith.constant 0 : i32
    %c0_i32_1 = arith.constant 0 : i32
    return %c0_i32, %c0_i32_0 : i32, i32
  }
  func.func @transform_4(%arg0: i32) -> (i32, i32) {
    %c0_i32 = arith.constant 0 : i32
    %c0_i32_0 = arith.constant 0 : i32
    %c0_i32_1 = arith.constant 0 : i32
    return %c0_i32, %c0_i32_0 : i32, i32
  }
  func.func @transform_5(%arg0: i32) -> (i32, i32) {
    %c0_i32 = arith.constant 0 : i32
    %c0_i32_0 = arith.constant 0 : i32
    return %c0_i32, %arg0 : i32, i32
  }
}

</mosaic_0001>

<llo_original>
// kernel: tpu_custom_call.1
$region0: #{tpu_custom_call.1}
  #allocation0 [shape = 'u32[]', space=smem, size = 0x4, offset = 0x4, fixed_abs, tag = 'smem constant byte address 0x4 - core index']
  #allocation1 [shape = 'u32[144,128]{1,0:T(1,128)}', space=vmem, size = 0x12000, scoped, tag = 'internal scratch']
  %s0 = inlined_call_operand.hbm [shape: bf16[9,10,256], index: 0, kind: input, shape index: {}]
  %s1 = inlined_call_operand.vmem [shape: bf16[32,10], index: 1, kind: input, shape index: {}]
  %s2 = inlined_call_operand.vmem [shape: f32[32,1], index: 2, kind: input, shape index: {}]
  %s3 = inlined_call_operand.vmem [shape: bf16[32,32], index: 3, kind: input, shape index: {}]
  %s4 = inlined_call_operand.vmem [shape: f32[32,1], index: 4, kind: input, shape index: {}]
  %s5 = inlined_call_operand.hbm [shape: f32[32,256], index: 5, kind: output, shape index: {}]
  %s6 = sld [smem:[#allocation0]]
  $region34: #{tpu_custom_call.1} parent=0
    _
  %s8 = ssub.s32 1, %s6
  %s9 = scalar_select 0, %s8, %s6
  $region1: #{tpu_custom_call.1} parent=0
    #allocation2 [shape = 'u8[73728]{0}', space=vmem, size = 0x12000, scoped, tag = 'input window, operand 0, single buffered']
    #allocation3 [shape = 's32[1]{0}', space=sflag, size = 0x4, scoped, tag = 'scoped memory for tpu_custom_call.1']
    #allocation4 [shape = 's32[1]{0}', space=sflag, size = 0x4, scoped, tag = 'scoped memory for tpu_custom_call.1']
    #allocation5 [shape = 'u8[32768]{0}', space=vmem, size = 0x8000, scoped, tag = 'output window, operand 0, single buffered']
    %10 = vsyncpa [#allocation3], 0
    %11 = vsyncpa [#allocation4], 0
    // Predicated region
    $region2: #{tpu_custom_call.1} parent=1 // pred_check
      _
    $region3: #{tpu_custom_call.1} parent=1 // pred_check_branch
      %13 = sbr.rel (0) target = $region5
    $region4: #{tpu_custom_call.1} parent=1 // pred_region
      %s15 = ssub.s32 2304, 2304
      %16 = vsyncadd [#allocation3], %s15
      %s17 = sshll.u32 [#allocation2], 4
      %s18 = int_to_ptr.vmem [resolvable:$true] %s17
      %23 = dma.hbm_to_vmem [thread:$0]  %s0, 2304, %s18, [#allocation3], 128, 128, 8
    $region5: #{tpu_custom_call.1} parent=1 // pred_fallthru
      _
    // Predicated region
    $region6: #{tpu_custom_call.1} parent=1 // pred_check
      _
    $region7: #{tpu_custom_call.1} parent=1 // pred_check_branch
      %25 = sbr.rel (0) target = $region9
    $region8: #{tpu_custom_call.1} parent=1 // pred_region
      _
    $region9: #{tpu_custom_call.1} parent=1 // pred_fallthru
      _
    // Predicated region
    $region10: #{tpu_custom_call.1} parent=1 // pred_check
      _
    $region11: #{tpu_custom_call.1} parent=1 // pred_check_branch
      %27 = sbr.rel (0) target = $region13
    $region12: #{tpu_custom_call.1} parent=1 // pred_region
      _
    $region13: #{tpu_custom_call.1} parent=1 // pred_fallthru
      _
    // Predicated region
    $region14: #{tpu_custom_call.1} parent=1 // pred_check
      _
    $region15: #{tpu_custom_call.1} parent=1 // pred_check_branch
      %29 = sbr.rel (0) target = $region17
    $region16: #{tpu_custom_call.1} parent=1 // pred_region
      _
    $region17: #{tpu_custom_call.1} parent=1 // pred_fallthru
      _
    // Predicated region
    $region18: #{tpu_custom_call.1} parent=1 // pred_check
      _
    $region19: #{tpu_custom_call.1} parent=1 // pred_check_branch
      %31 = sbr.rel (0) target = $region21
    $region20: #{tpu_custom_call.1} parent=1 // pred_region
      _
    $region21: #{tpu_custom_call.1} parent=1 // pred_fallthru
      _
    // Predicated region
    $region22: #{tpu_custom_call.1} parent=1 // pred_check
      _
    $region23: #{tpu_custom_call.1} parent=1 // pred_check_branch
      %33 = sbr.rel (0) target = $region25
    $region24: #{tpu_custom_call.1} parent=1 // pred_region
      %34 = dma.done [#allocation3], 2304
    $region25: #{tpu_custom_call.1} parent=1 // pred_fallthru
      _
    %v36 = vld [vmem:[%s1] sm:$0xf]
    %v37 = vld [vmem:[%s1 + $0x4] sm:$0xf]
    %v38 = vld [vmem:[%s1 + $0x8] sm:$0xf]
    %v39 = vld [vmem:[%s1 + $0xc] sm:$0xf]
    %v40 = vld [vmem:[%s3] sm:$0xf]
    %v41 = vld [vmem:[%s3 + $0x4] sm:$0xf]
    %v42 = vld [vmem:[%s3 + $0x8] sm:$0xf]
    %v43 = vld [vmem:[%s3 + $0xc] sm:$0xf]
    %v44 = vld [vmem:[%s2] sm:$0xff]
    %v45 = vld [vmem:[%s2 + $0x8] sm:$0xff]
    %v46 = vld [vmem:[%s2 + $0x10] sm:$0xff]
    %v47 = vld [vmem:[%s2 + $0x18] sm:$0xff]
    %49 = vset.pattern.permute.xlu0 0
    %50 = vperm.xlu0 %49, %v44
    %v51 = vpop.permute.xlu0 %50
    %54 = vset.pattern.permute.xlu0 0
    %55 = vperm.xlu0 %54, %v45
    %v56 = vpop.permute.xlu0 %55
    %59 = vset.pattern.permute.xlu0 0
    %60 = vperm.xlu0 %59, %v46
    %v61 = vpop.permute.xlu0 %60
    %64 = vset.pattern.permute.xlu0 0
    %65 = vperm.xlu0 %64, %v47
    %v66 = vpop.permute.xlu0 %65
    %v68 = vld [vmem:[%s4] sm:$0xff]
    %v69 = vld [vmem:[%s4 + $0x8] sm:$0xff]
    %v70 = vld [vmem:[%s4 + $0x10] sm:$0xff]
    %v71 = vld [vmem:[%s4 + $0x18] sm:$0xff]
    %73 = vset.pattern.permute.xlu0 0
    %74 = vperm.xlu0 %73, %v68
    %v75 = vpop.permute.xlu0 %74
    %78 = vset.pattern.permute.xlu0 0
    %79 = vperm.xlu0 %78, %v69
    %v80 = vpop.permute.xlu0 %79
    %83 = vset.pattern.permute.xlu0 0
    %84 = vperm.xlu0 %83, %v70
    %v85 = vpop.permute.xlu0 %84
    %88 = vset.pattern.permute.xlu0 0
    %89 = vperm.xlu0 %88, %v71
    %v90 = vpop.permute.xlu0 %89
    %v92 = vld [vmem:[#allocation2] sm:$0xff]
    %v93 = vld [vmem:[#allocation2 + $0x8] sm:$0x11]
    %v98 = vunpack.c.l.b16 %v36
    %v99 = vunpack.c.l.b16 %v37
    %v100 = vunpack.c.l.b16 %v38
    %v101 = vunpack.c.l.b16 %v39
    %v102 = vpack.c.b16 %v99, %v98
    %v103 = vpack.c.b16 %v101, %v100
    %v106 = vunpack.c.l.b16 %v92
    %v107 = vunpack.c.h.b16 %v92
    %v108 = vunpack.c.l.b16 %v93
    %v109 = vunpack.c.h.b16 %v93
    %v110 = vpack.c.b16 %v108, %v106
    %v111 = vpack.c.b16 %v109, %v107
    %vm112 = vcmask 80896
    %v114 = vsel %vm112, %v102, 0
    %v117 = vsel %vm112, %v103, 0
    %vm119 = vcmask 1044480
    %v121 = vsel %vm119, %v110, 0
    %v124 = vsel %vm119, %v111, 0
    %126 = vmatprep.subr.bf16.mxu0 0
    %127 = vmatpush1.bf16.msra.mxu0 0
    %128 = vmatprep.subr.bf16.mxu0 0
    %129 = vmatpush1.bf16.msra.mxu0 0
    %130 = vmatprep.subr.bf16.mxu0 0
    %131 = vmatpush1.bf16.msra.mxu0 0
    %132 = vmatprep.subr.bf16.mxu0 0
    %133 = vmatpush1.bf16.msra.mxu0 0
    %134 = vmatprep.subr.bf16.mxu0 0
    %135 = vmatpush1.bf16.msra.mxu0 0
    %136 = vmatprep.subr.bf16.mxu0 0
    %137 = vmatpush1.bf16.msra.mxu0 0
    %138 = vmatprep.subr.bf16.mxu0 0
    %139 = vmatpush1.bf16.msra.mxu0 0
    %140 = vmatprep.subr.bf16.mxu0 %v124
    %141 = vmatpush1.bf16.msra.mxu0 %v121
    %142 = vmatprep.subr.bf16.mxu0 0
    %143 = vmatpush2.bf16.msra.mxu0 0
    %144 = vmatprep.subr.bf16.mxu0 0
    %145 = vmatpush2.bf16.msra.mxu0 0
    %146 = vmatprep.subr.bf16.mxu0 0
    %147 = vmatpush2.bf16.msra.mxu0 0
    %148 = vmatprep.subr.bf16.mxu0 0
    %149 = vmatpush2.bf16.msra.mxu0 0
    %150 = vmatprep.subr.bf16.mxu0 0
    %151 = vmatpush2.bf16.msra.mxu0 0
    %152 = vmatprep.subr.bf16.mxu0 0
    %153 = vmatpush2.bf16.msra.mxu0 0
    %154 = vmatprep.subr.bf16.mxu0 0
    %155 = vmatpush2.bf16.msra.mxu0 0
    %156 = vmatprep.subr.bf16.mxu0 0
    %157 = vmatpush2.bf16.msra.mxu0 0
    %158 = vmatprep.mubr.bf16.mxu0 0
    %159 = vmatmul.mubr.bf16.gmra.mxu0 %v114
    %v160 = vpop.f32.mrf.mxu0
    %v161 = vadd.f32 %v51, %v160
    %v162 = vpop.f32.mrf.mxu0
    %v163 = vadd.f32 %v51, %v162
    %v164 = vpop.f32.mrf.mxu0
    %v165 = vadd.f32 %v56, %v164
    %v166 = vpop.f32.mrf.mxu0
    %v167 = vadd.f32 %v56, %v166
    %168 = vmatprep.mubr.bf16.mxu0 0
    %169 = vmatmul.mubr.bf16.gmra.mxu0 %v117
    %v170 = vpop.f32.mrf.mxu0
    %v171 = vadd.f32 %v61, %v170
    %v172 = vpop.f32.mrf.mxu0
    %v173 = vadd.f32 %v61, %v172
    %v174 = vpop.f32.mrf.mxu0
    %v175 = vadd.f32 %v66, %v174
    %v176 = vpop.f32.mrf.mxu0
    %v177 = vadd.f32 %v66, %v176
    %178 = vdwg.mxu0
    %v179 = vmax.f32 %v161, 0.0
    %v180 = vmax.f32 %v163, 0.0
    %v181 = vmax.f32 %v165, 0.0
    %v182 = vmax.f32 %v167, 0.0
    %v183 = vmax.f32 %v171, 0.0
    %v184 = vmax.f32 %v173, 0.0
    %v185 = vmax.f32 %v175, 0.0
    %v186 = vmax.f32 %v177, 0.0
    %v187 = vadd.f32 %v179, 0.0
    %v188 = vadd.f32 %v180, 0.0
    %v189 = vadd.f32 %v181, 0.0
    %v190 = vadd.f32 %v182, 0.0
    %v191 = vadd.f32 %v183, 0.0
    %v192 = vadd.f32 %v184, 0.0
    %v193 = vadd.f32 %v185, 0.0
    %v194 = vadd.f32 %v186, 0.0
    %s195 = scalar_lea.vmem [#allocation2], 16
    %v196 = vld [vmem:[%s195] sm:$0xff]
    %v197 = vld [vmem:[%s195 + $0x8] sm:$0x11]
    %v200 = vunpack.c.l.b16 %v196
    %v201 = vunpack.c.h.b16 %v196
    %v202 = vunpack.c.l.b16 %v197
    %v203 = vunpack.c.h.b16 %v197
    %v204 = vpack.c.b16 %v202, %v200
    %v205 = vpack.c.b16 %v203, %v201
    %v207 = vsel %vm119, %v204, 0
    %v210 = vsel %vm119, %v205, 0
    %212 = vmatprep.subr.bf16.mxu0 0
    %213 = vmatpush1.bf16.msra.mxu0 0
    %214 = vmatprep.subr.bf16.mxu0 0
    %215 = vmatpush1.bf16.msra.mxu0 0
    %216 = vmatprep.subr.bf16.mxu0 0
    %217 = vmatpush1.bf16.msra.mxu0 0
    %218 = vmatprep.subr.bf16.mxu0 0
    %219 = vmatpush1.bf16.msra.mxu0 0
    %220 = vmatprep.subr.bf16.mxu0 0
    %221 = vmatpush1.bf16.msra.mxu0 0
    %222 = vmatprep.subr.bf16.mxu0 0
    %223 = vmatpush1.bf16.msra.mxu0 0
    %224 = vmatprep.subr.bf16.mxu0 0
    %225 = vmatpush1.bf16.msra.mxu0 0
    %226 = vmatprep.subr.bf16.mxu0 %v210
    %227 = vmatpush1.bf16.msra.mxu0 %v207
    %228 = vmatprep.subr.bf16.mxu0 0
    %229 = vmatpush2.bf16.msra.mxu0 0
    %230 = vmatprep.subr.bf16.mxu0 0
    %231 = vmatpush2.bf16.msra.mxu0 0
    %232 = vmatprep.subr.bf16.mxu0 0
    %233 = vmatpush2.bf16.msra.mxu0 0
    %234 = vmatprep.subr.bf16.mxu0 0
    %235 = vmatpush2.bf16.msra.mxu0 0
    %236 = vmatprep.subr.bf16.mxu0 0
    %237 = vmatpush2.bf16.msra.mxu0 0
    %238 = vmatprep.subr.bf16.mxu0 0
    %239 = vmatpush2.bf16.msra.mxu0 0
    %240 = vmatprep.subr.bf16.mxu0 0
    %241 = vmatpush2.bf16.msra.mxu0 0
    %242 = vmatprep.subr.bf16.mxu0 0
    %243 = vmatpush2.bf16.msra.mxu0 0
    %244 = vmatprep.mubr.bf16.mxu0 0
    %245 = vmatmul.mubr.bf16.gmra.mxu0 %v114
    %v246 = vpop.f32.mrf.mxu0
    %v247 = vadd.f32 %v51, %v246
    %v248 = vpop.f32.mrf.mxu0
    %v249 = vadd.f32 %v51, %v248
    %v250 = vpop.f32.mrf.mxu0
    %v251 = vadd.f32 %v56, %v250
    %v252 = vpop.f32.mrf.mxu0
    %v253 = vadd.f32 %v56, %v252
    %254 = vmatprep.mubr.bf16.mxu0 0
    %255 = vmatmul.mubr.bf16.gmra.mxu0 %v117
    %v256 = vpop.f32.mrf.mxu0
    %v257 = vadd.f32 %v61, %v256
    %v258 = vpop.f32.mrf.mxu0
    %v259 = vadd.f32 %v61, %v258
    %v260 = vpop.f32.mrf.mxu0
    %v261 = vadd.f32 %v66, %v260
    %v262 = vpop.f32.mrf.mxu0
    %v263 = vadd.f32 %v66, %v262
    %264 = vdwg.mxu0
    %v265 = vmax.f32 %v247, 0.0
    %v266 = vmax.f32 %v249, 0.0
    %v267 = vmax.f32 %v251, 0.0
    %v268 = vmax.f32 %v253, 0.0
    %v269 = vmax.f32 %v257, 0.0
    %v270 = vmax.f32 %v259, 0.0
    %v271 = vmax.f32 %v261, 0.0
    %v272 = vmax.f32 %v263, 0.0
    %v273 = vadd.f32 %v187, %v265
    %v274 = vadd.f32 %v188, %v266
    %v275 = vadd.f32 %v189, %v267
    %v276 = vadd.f32 %v190, %v268
    %v277 = vadd.f32 %v191, %v269
    %v278 = vadd.f32 %v192, %v270
    %v279 = vadd.f32 %v193, %v271
    %v280 = vadd.f32 %v194, %v272
    %s281 = scalar_lea.vmem [#allocation2], 32
    %v282 = vld [vmem:[%s281] sm:$0xff]
    %v283 = vld [vmem:[%s281 + $0x8] sm:$0x11]
    %v286 = vunpack.c.l.b16 %v282
    %v287 = vunpack.c.h.b16 %v282
    %v288 = vunpack.c.l.b16 %v283
    %v289 = vunpack.c.h.b16 %v283
    %v290 = vpack.c.b16 %v288, %v286
    %v291 = vpack.c.b16 %v289, %v287
    %v293 = vsel %vm119, %v290, 0
    %v296 = vsel %vm119, %v291, 0
    %298 = vmatprep.subr.bf16.mxu0 0
    %299 = vmatpush1.bf16.msra.mxu0 0
    %300 = vmatprep.subr.bf16.mxu0 0
    %301 = vmatpush1.bf16.msra.mxu0 0
    %302 = vmatprep.subr.bf16.mxu0 0
    %303 = vmatpush1.bf16.msra.mxu0 0
    %304 = vmatprep.subr.bf16.mxu0 0
    %305 = vmatpush1.bf16.msra.mxu0 0
    %306 = vmatprep.subr.bf16.mxu0 0
    %307 = vmatpush1.bf16.msra.mxu0 0
    %308 = vmatprep.subr.bf16.mxu0 0
    %309 = vmatpush1.bf16.msra.mxu0 0
    %310 = vmatprep.subr.bf16.mxu0 0
    %311 = vmatpush1.bf16.msra.mxu0 0
    %312 = vmatprep.subr.bf16.mxu0 %v296
    %313 = vmatpush1.bf16.msra.mxu0 %v293
    %314 = vmatprep.subr.bf16.mxu0 0
    %315 = vmatpush2.bf16.msra.mxu0 0
    %316 = vmatprep.subr.bf16.mxu0 0
    %317 = vmatpush2.bf16.msra.mxu0 0
    %318 = vmatprep.subr.bf16.mxu0 0
    %319 = vmatpush2.bf16.msra.mxu0 0
    %320 = vmatprep.subr.bf16.mxu0 0
    %321 = vmatpush2.bf16.msra.mxu0 0
    %322 = vmatprep.subr.bf16.mxu0 0
    %323 = vmatpush2.bf16.msra.mxu0 0
    %324 = vmatprep.subr.bf16.mxu0 0
    %325 = vmatpush2.bf16.msra.mxu0 0
    %326 = vmatprep.subr.bf16.mxu0 0
    %327 = vmatpush2.bf16.msra.mxu0 0
    %328 = vmatprep.subr.bf16.mxu0 0
    %329 = vmatpush2.bf16.msra.mxu0 0
    %330 = vmatprep.mubr.bf16.mxu0 0
    %331 = vmatmul.mubr.bf16.gmra.mxu0 %v114
    %v332 = vpop.f32.mrf.mxu0
    %v333 = vadd.f32 %v51, %v332
    %v334 = vpop.f32.mrf.mxu0
    %v335 = vadd.f32 %v51, %v334
    %v336 = vpop.f32.mrf.mxu0
    %v337 = vadd.f32 %v56, %v336
    %v338 = vpop.f32.mrf.mxu0
    %v339 = vadd.f32 %v56, %v338
    %340 = vmatprep.mubr.bf16.mxu0 0
    %341 = vmatmul.mubr.bf16.gmra.mxu0 %v117
    %v342 = vpop.f32.mrf.mxu0
    %v343 = vadd.f32 %v61, %v342
    %v344 = vpop.f32.mrf.mxu0
    %v345 = vadd.f32 %v61, %v344
    %v346 = vpop.f32.mrf.mxu0
    %v347 = vadd.f32 %v66, %v346
    %v348 = vpop.f32.mrf.mxu0
    %v349 = vadd.f32 %v66, %v348
    %350 = vdwg.mxu0
    %v351 = vmax.f32 %v333, 0.0
    %v352 = vmax.f32 %v335, 0.0
    %v353 = vmax.f32 %v337, 0.0
    %v354 = vmax.f32 %v339, 0.0
    %v355 = vmax.f32 %v343, 0.0
    %v356 = vmax.f32 %v345, 0.0
    %v357 = vmax.f32 %v347, 0.0
    %v358 = vmax.f32 %v349, 0.0
    %v359 = vadd.f32 %v273, %v351
    %v360 = vadd.f32 %v274, %v352
    %v361 = vadd.f32 %v275, %v353
    %v362 = vadd.f32 %v276, %v354
    %v363 = vadd.f32 %v277, %v355
    %v364 = vadd.f32 %v278, %v356
    %v365 = vadd.f32 %v279, %v357
    %v366 = vadd.f32 %v280, %v358
    %s367 = scalar_lea.vmem [#allocation2], 48
    %v368 = vld [vmem:[%s367] sm:$0xff]
    %v369 = vld [vmem:[%s367 + $0x8] sm:$0x11]
    %v372 = vunpack.c.l.b16 %v368
    %v373 = vunpack.c.h.b16 %v368
    %v374 = vunpack.c.l.b16 %v369
    %v375 = vunpack.c.h.b16 %v369
    %v376 = vpack.c.b16 %v374, %v372
    %v377 = vpack.c.b16 %v375, %v373
    %v379 = vsel %vm119, %v376, 0
    %v382 = vsel %vm119, %v377, 0
    %384 = vmatprep.subr.bf16.mxu0 0
    %385 = vmatpush1.bf16.msra.mxu0 0
    %386 = vmatprep.subr.bf16.mxu0 0
    %387 = vmatpush1.bf16.msra.mxu0 0
    %388 = vmatprep.subr.bf16.mxu0 0
    %389 = vmatpush1.bf16.msra.mxu0 0
    %390 = vmatprep.subr.bf16.mxu0 0
    %391 = vmatpush1.bf16.msra.mxu0 0
    %392 = vmatprep.subr.bf16.mxu0 0
    %393 = vmatpush1.bf16.msra.mxu0 0
    %394 = vmatprep.subr.bf16.mxu0 0
    %395 = vmatpush1.bf16.msra.mxu0 0
    %396 = vmatprep.subr.bf16.mxu0 0
    %397 = vmatpush1.bf16.msra.mxu0 0
    %398 = vmatprep.subr.bf16.mxu0 %v382
    %399 = vmatpush1.bf16.msra.mxu0 %v379
    %400 = vmatprep.subr.bf16.mxu0 0
    %401 = vmatpush2.bf16.msra.mxu0 0
    %402 = vmatprep.subr.bf16.mxu0 0
    %403 = vmatpush2.bf16.msra.mxu0 0
    %404 = vmatprep.subr.bf16.mxu0 0
    %405 = vmatpush2.bf16.msra.mxu0 0
    %406 = vmatprep.subr.bf16.mxu0 0
    %407 = vmatpush2.bf16.msra.mxu0 0
    %408 = vmatprep.subr.bf16.mxu0 0
    %409 = vmatpush2.bf16.msra.mxu0 0
    %410 = vmatprep.subr.bf16.mxu0 0
    %411 = vmatpush2.bf16.msra.mxu0 0
    %412 = vmatprep.subr.bf16.mxu0 0
    %413 = vmatpush2.bf16.msra.mxu0 0
    %414 = vmatprep.subr.bf16.mxu0 0
    %415 = vmatpush2.bf16.msra.mxu0 0
    %416 = vmatprep.mubr.bf16.mxu0 0
    %417 = vmatmul.mubr.bf16.gmra.mxu0 %v114
    %v418 = vpop.f32.mrf.mxu0
    %v419 = vadd.f32 %v51, %v418
    %v420 = vpop.f32.mrf.mxu0
    %v421 = vadd.f32 %v51, %v420
    %v422 = vpop.f32.mrf.mxu0
    %v423 = vadd.f32 %v56, %v422
    %v424 = vpop.f32.mrf.mxu0
    %v425 = vadd.f32 %v56, %v424
    %426 = vmatprep.mubr.bf16.mxu0 0
    %427 = vmatmul.mubr.bf16.gmra.mxu0 %v117
    %v428 = vpop.f32.mrf.mxu0
    %v429 = vadd.f32 %v61, %v428
    %v430 = vpop.f32.mrf.mxu0
    %v431 = vadd.f32 %v61, %v430
    %v432 = vpop.f32.mrf.mxu0
    %v433 = vadd.f32 %v66, %v432
    %v434 = vpop.f32.mrf.mxu0
    %v435 = vadd.f32 %v66, %v434
    %436 = vdwg.mxu0
    %v437 = vmax.f32 %v419, 0.0
    %v438 = vmax.f32 %v421, 0.0
    %v439 = vmax.f32 %v423, 0.0
    %v440 = vmax.f32 %v425, 0.0
    %v441 = vmax.f32 %v429, 0.0
    %v442 = vmax.f32 %v431, 0.0
    %v443 = vmax.f32 %v433, 0.0
    %v444 = vmax.f32 %v435, 0.0
    %v445 = vadd.f32 %v359, %v437
    %v446 = vadd.f32 %v360, %v438
    %v447 = vadd.f32 %v361, %v439
    %v448 = vadd.f32 %v362, %v440
    %v449 = vadd.f32 %v363, %v441
    %v450 = vadd.f32 %v364, %v442
    %v451 = vadd.f32 %v365, %v443
    %v452 = vadd.f32 %v366, %v444
    %s453 = scalar_lea.vmem [#allocation2], 64
    %v454 = vld [vmem:[%s453] sm:$0xff]
    %v455 = vld [vmem:[%s453 + $0x8] sm:$0x11]
    %v458 = vunpack.c.l.b16 %v454
    %v459 = vunpack.c.h.b16 %v454
    %v460 = vunpack.c.l.b16 %v455
    %v461 = vunpack.c.h.b16 %v455
    %v462 = vpack.c.b16 %v460, %v458
    %v463 = vpack.c.b16 %v461, %v459
    %v465 = vsel %vm119, %v462, 0
    %v468 = vsel %vm119, %v463, 0
    %470 = vmatprep.subr.bf16.mxu0 0
    %471 = vmatpush1.bf16.msra.mxu0 0
    %472 = vmatprep.subr.bf16.mxu0 0
    %473 = vmatpush1.bf16.msra.mxu0 0
    %474 = vmatprep.subr.bf16.mxu0 0
    %475 = vmatpush1.bf16.msra.mxu0 0
    %476 = vmatprep.subr.bf16.mxu0 0
    %477 = vmatpush1.bf16.msra.mxu0 0
    %478 = vmatprep.subr.bf16.mxu0 0
    %479 = vmatpush1.bf16.msra.mxu0 0
    %480 = vmatprep.subr.bf16.mxu0 0
    %481 = vmatpush1.bf16.msra.mxu0 0
    %482 = vmatprep.subr.bf16.mxu0 0
    %483 = vmatpush1.bf16.msra.mxu0 0
    %484 = vmatprep.subr.bf16.mxu0 %v468
    %485 = vmatpush1.bf16.msra.mxu0 %v465
    %486 = vmatprep.subr.bf16.mxu0 0
    %487 = vmatpush2.bf16.msra.mxu0 0
    %488 = vmatprep.subr.bf16.mxu0 0
    %489 = vmatpush2.bf16.msra.mxu0 0
    %490 = vmatprep.subr.bf16.mxu0 0
    %491 = vmatpush2.bf16.msra.mxu0 0
    %492 = vmatprep.subr.bf16.mxu0 0
    %493 = vmatpush2.bf16.msra.mxu0 0
    %494 = vmatprep.subr.bf16.mxu0 0
    %495 = vmatpush2.bf16.msra.mxu0 0
    %496 = vmatprep.subr.bf16.mxu0 0
    %497 = vmatpush2.bf16.msra.mxu0 0
    %498 = vmatprep.subr.bf16.mxu0 0
    %499 = vmatpush2.bf16.msra.mxu0 0
    %500 = vmatprep.subr.bf16.mxu0 0
    %501 = vmatpush2.bf16.msra.mxu0 0
    %502 = vmatprep.mubr.bf16.mxu0 0
    %503 = vmatmul.mubr.bf16.gmra.mxu0 %v114
    %v504 = vpop.f32.mrf.mxu0
    %v505 = vadd.f32 %v51, %v504
    %v506 = vpop.f32.mrf.mxu0
    %v507 = vadd.f32 %v51, %v506
    %v508 = vpop.f32.mrf.mxu0
    %v509 = vadd.f32 %v56, %v508
    %v510 = vpop.f32.mrf.mxu0
    %v511 = vadd.f32 %v56, %v510
    %512 = vmatprep.mubr.bf16.mxu0 0
    %513 = vmatmul.mubr.bf16.gmra.mxu0 %v117
    %v514 = vpop.f32.mrf.mxu0
    %v515 = vadd.f32 %v61, %v514
    %v516 = vpop.f32.mrf.mxu0
    %v517 = vadd.f32 %v61, %v516
    %v518 = vpop.f32.mrf.mxu0
    %v519 = vadd.f32 %v66, %v518
    %v520 = vpop.f32.mrf.mxu0
    %v521 = vadd.f32 %v66, %v520
    %522 = vdwg.mxu0
    %v523 = vmax.f32 %v505, 0.0
    %v524 = vmax.f32 %v507, 0.0
    %v525 = vmax.f32 %v509, 0.0
    %v526 = vmax.f32 %v511, 0.0
    %v527 = vmax.f32 %v515, 0.0
    %v528 = vmax.f32 %v517, 0.0
    %v529 = vmax.f32 %v519, 0.0
    %v530 = vmax.f32 %v521, 0.0
    %v531 = vadd.f32 %v445, %v523
    %v532 = vadd.f32 %v446, %v524
    %v533 = vadd.f32 %v447, %v525
    %v534 = vadd.f32 %v448, %v526
    %v535 = vadd.f32 %v449, %v527
    %v536 = vadd.f32 %v450, %v528
    %v537 = vadd.f32 %v451, %v529
    %v538 = vadd.f32 %v452, %v530
    %s539 = scalar_lea.vmem [#allocation2], 80
    %v540 = vld [vmem:[%s539] sm:$0xff]
    %v541 = vld [vmem:[%s539 + $0x8] sm:$0x11]
    %v544 = vunpack.c.l.b16 %v540
    %v545 = vunpack.c.h.b16 %v540
    %v546 = vunpack.c.l.b16 %v541
    %v547 = vunpack.c.h.b16 %v541
    %v548 = vpack.c.b16 %v546, %v544
    %v549 = vpack.c.b16 %v547, %v545
    %v551 = vsel %vm119, %v548, 0
    %v554 = vsel %vm119, %v549, 0
    %556 = vmatprep.subr.bf16.mxu0 0
    %557 = vmatpush1.bf16.msra.mxu0 0
    %558 = vmatprep.subr.bf16.mxu0 0
    %559 = vmatpush1.bf16.msra.mxu0 0
    %560 = vmatprep.subr.bf16.mxu0 0
    %561 = vmatpush1.bf16.msra.mxu0 0
    %562 = vmatprep.subr.bf16.mxu0 0
    %563 = vmatpush1.bf16.msra.mxu0 0
    %564 = vmatprep.subr.bf16.mxu0 0
    %565 = vmatpush1.bf16.msra.mxu0 0
    %566 = vmatprep.subr.bf16.mxu0 0
    %567 = vmatpush1.bf16.msra.mxu0 0
    %568 = vmatprep.subr.bf16.mxu0 0
    %569 = vmatpush1.bf16.msra.mxu0 0
    %570 = vmatprep.subr.bf16.mxu0 %v554
    %571 = vmatpush1.bf16.msra.mxu0 %v551
    %572 = vmatprep.subr.bf16.mxu0 0
    %573 = vmatpush2.bf16.msra.mxu0 0
    %574 = vmatprep.subr.bf16.mxu0 0
    %575 = vmatpush2.bf16.msra.mxu0 0
    %576 = vmatprep.subr.bf16.mxu0 0
    %577 = vmatpush2.bf16.msra.mxu0 0
    %578 = vmatprep.subr.bf16.mxu0 0
    %579 = vmatpush2.bf16.msra.mxu0 0
    %580 = vmatprep.subr.bf16.mxu0 0
    %581 = vmatpush2.bf16.msra.mxu0 0
    %582 = vmatprep.subr.bf16.mxu0 0
    %583 = vmatpush2.bf16.msra.mxu0 0
    %584 = vmatprep.subr.bf16.mxu0 0
    %585 = vmatpush2.bf16.msra.mxu0 0
    %586 = vmatprep.subr.bf16.mxu0 0
    %587 = vmatpush2.bf16.msra.mxu0 0
    %588 = vmatprep.mubr.bf16.mxu0 0
    %589 = vmatmul.mubr.bf16.gmra.mxu0 %v114
    %v590 = vpop.f32.mrf.mxu0
    %v591 = vadd.f32 %v51, %v590
    %v592 = vpop.f32.mrf.mxu0
    %v593 = vadd.f32 %v51, %v592
    %v594 = vpop.f32.mrf.mxu0
    %v595 = vadd.f32 %v56, %v594
    %v596 = vpop.f32.mrf.mxu0
    %v597 = vadd.f32 %v56, %v596
    %598 = vmatprep.mubr.bf16.mxu0 0
    %599 = vmatmul.mubr.bf16.gmra.mxu0 %v117
    %v600 = vpop.f32.mrf.mxu0
    %v601 = vadd.f32 %v61, %v600
    %v602 = vpop.f32.mrf.mxu0
    %v603 = vadd.f32 %v61, %v602
    %v604 = vpop.f32.mrf.mxu0
    %v605 = vadd.f32 %v66, %v604
    %v606 = vpop.f32.mrf.mxu0
    %v607 = vadd.f32 %v66, %v606
    %608 = vdwg.mxu0
    %v609 = vmax.f32 %v591, 0.0
    %v610 = vmax.f32 %v593, 0.0
    %v611 = vmax.f32 %v595, 0.0
    %v612 = vmax.f32 %v597, 0.0
    %v613 = vmax.f32 %v601, 0.0
    %v614 = vmax.f32 %v603, 0.0
    %v615 = vmax.f32 %v605, 0.0
    %v616 = vmax.f32 %v607, 0.0
    %v617 = vadd.f32 %v531, %v609
    %v618 = vadd.f32 %v532, %v610
    %v619 = vadd.f32 %v533, %v611
    %v620 = vadd.f32 %v534, %v612
    %v621 = vadd.f32 %v535, %v613
    %v622 = vadd.f32 %v536, %v614
    %v623 = vadd.f32 %v537, %v615
    %v624 = vadd.f32 %v538, %v616
    %s625 = scalar_lea.vmem [#allocation2], 96
    %v626 = vld [vmem:[%s625] sm:$0xff]
    %v627 = vld [vmem:[%s625 + $0x8] sm:$0x11]
    %v630 = vunpack.c.l.b16 %v626
    %v631 = vunpack.c.h.b16 %v626
    %v632 = vunpack.c.l.b16 %v627
    %v633 = vunpack.c.h.b16 %v627
    %v634 = vpack.c.b16 %v632, %v630
    %v635 = vpack.c.b16 %v633, %v631
    %v637 = vsel %vm119, %v634, 0
    %v640 = vsel %vm119, %v635, 0
    %642 = vmatprep.subr.bf16.mxu0 0
    %643 = vmatpush1.bf16.msra.mxu0 0
    %644 = vmatprep.subr.bf16.mxu0 0
    %645 = vmatpush1.bf16.msra.mxu0 0
    %646 = vmatprep.subr.bf16.mxu0 0
    %647 = vmatpush1.bf16.msra.mxu0 0
    %648 = vmatprep.subr.bf16.mxu0 0
    %649 = vmatpush1.bf16.msra.mxu0 0
    %650 = vmatprep.subr.bf16.mxu0 0
    %651 = vmatpush1.bf16.msra.mxu0 0
    %652 = vmatprep.subr.bf16.mxu0 0
    %653 = vmatpush1.bf16.msra.mxu0 0
    %654 = vmatprep.subr.bf16.mxu0 0
    %655 = vmatpush1.bf16.msra.mxu0 0
    %656 = vmatprep.subr.bf16.mxu0 %v640
    %657 = vmatpush1.bf16.msra.mxu0 %v637
    %658 = vmatprep.subr.bf16.mxu0 0
    %659 = vmatpush2.bf16.msra.mxu0 0
    %660 = vmatprep.subr.bf16.mxu0 0
    %661 = vmatpush2.bf16.msra.mxu0 0
    %662 = vmatprep.subr.bf16.mxu0 0
    %663 = vmatpush2.bf16.msra.mxu0 0
    %664 = vmatprep.subr.bf16.mxu0 0
    %665 = vmatpush2.bf16.msra.mxu0 0
    %666 = vmatprep.subr.bf16.mxu0 0
    %667 = vmatpush2.bf16.msra.mxu0 0
    %668 = vmatprep.subr.bf16.mxu0 0
    %669 = vmatpush2.bf16.msra.mxu0 0
    %670 = vmatprep.subr.bf16.mxu0 0
    %671 = vmatpush2.bf16.msra.mxu0 0
    %672 = vmatprep.subr.bf16.mxu0 0
    %673 = vmatpush2.bf16.msra.mxu0 0
    %674 = vmatprep.mubr.bf16.mxu0 0
    %675 = vmatmul.mubr.bf16.gmra.mxu0 %v114
    %v676 = vpop.f32.mrf.mxu0
    %v677 = vadd.f32 %v51, %v676
    %v678 = vpop.f32.mrf.mxu0
    %v679 = vadd.f32 %v51, %v678
    %v680 = vpop.f32.mrf.mxu0
    %v681 = vadd.f32 %v56, %v680
    %v682 = vpop.f32.mrf.mxu0
    %v683 = vadd.f32 %v56, %v682
    %684 = vmatprep.mubr.bf16.mxu0 0
    %685 = vmatmul.mubr.bf16.gmra.mxu0 %v117
    %v686 = vpop.f32.mrf.mxu0
    %v687 = vadd.f32 %v61, %v686
    %v688 = vpop.f32.mrf.mxu0
    %v689 = vadd.f32 %v61, %v688
    %v690 = vpop.f32.mrf.mxu0
    %v691 = vadd.f32 %v66, %v690
    %v692 = vpop.f32.mrf.mxu0
    %v693 = vadd.f32 %v66, %v692
    %694 = vdwg.mxu0
    %v695 = vmax.f32 %v677, 0.0
    %v696 = vmax.f32 %v679, 0.0
    %v697 = vmax.f32 %v681, 0.0
    %v698 = vmax.f32 %v683, 0.0
    %v699 = vmax.f32 %v687, 0.0
    %v700 = vmax.f32 %v689, 0.0
    %v701 = vmax.f32 %v691, 0.0
    %v702 = vmax.f32 %v693, 0.0
    %v703 = vadd.f32 %v617, %v695
    %v704 = vadd.f32 %v618, %v696
    %v705 = vadd.f32 %v619, %v697
    %v706 = vadd.f32 %v620, %v698
    %v707 = vadd.f32 %v621, %v699
    %v708 = vadd.f32 %v622, %v700
    %v709 = vadd.f32 %v623, %v701
    %v710 = vadd.f32 %v624, %v702
    %s711 = scalar_lea.vmem [#allocation2], 112
    %v712 = vld [vmem:[%s711] sm:$0xff]
    %v713 = vld [vmem:[%s711 + $0x8] sm:$0x11]
    %v716 = vunpack.c.l.b16 %v712
    %v717 = vunpack.c.h.b16 %v712
    %v718 = vunpack.c.l.b16 %v713
    %v719 = vunpack.c.h.b16 %v713
    %v720 = vpack.c.b16 %v718, %v716
    %v721 = vpack.c.b16 %v719, %v717
    %v723 = vsel %vm119, %v720, 0
    %v726 = vsel %vm119, %v721, 0
    %728 = vmatprep.subr.bf16.mxu0 0
    %729 = vmatpush1.bf16.msra.mxu0 0
    %730 = vmatprep.subr.bf16.mxu0 0
    %731 = vmatpush1.bf16.msra.mxu0 0
    %732 = vmatprep.subr.bf16.mxu0 0
    %733 = vmatpush1.bf16.msra.mxu0 0
    %734 = vmatprep.subr.bf16.mxu0 0
    %735 = vmatpush1.bf16.msra.mxu0 0
    %736 = vmatprep.subr.bf16.mxu0 0
    %737 = vmatpush1.bf16.msra.mxu0 0
    %738 = vmatprep.subr.bf16.mxu0 0
    %739 = vmatpush1.bf16.msra.mxu0 0
    %740 = vmatprep.subr.bf16.mxu0 0
    %741 = vmatpush1.bf16.msra.mxu0 0
    %742 = vmatprep.subr.bf16.mxu0 %v726
    %743 = vmatpush1.bf16.msra.mxu0 %v723
    %744 = vmatprep.subr.bf16.mxu0 0
    %745 = vmatpush2.bf16.msra.mxu0 0
    %746 = vmatprep.subr.bf16.mxu0 0
    %747 = vmatpush2.bf16.msra.mxu0 0
    %748 = vmatprep.subr.bf16.mxu0 0
    %749 = vmatpush2.bf16.msra.mxu0 0
    %750 = vmatprep.subr.bf16.mxu0 0
    %751 = vmatpush2.bf16.msra.mxu0 0
    %752 = vmatprep.subr.bf16.mxu0 0
    %753 = vmatpush2.bf16.msra.mxu0 0
    %754 = vmatprep.subr.bf16.mxu0 0
    %755 = vmatpush2.bf16.msra.mxu0 0
    %756 = vmatprep.subr.bf16.mxu0 0
    %757 = vmatpush2.bf16.msra.mxu0 0
    %758 = vmatprep.subr.bf16.mxu0 0
    %759 = vmatpush2.bf16.msra.mxu0 0
    %760 = vmatprep.mubr.bf16.mxu0 0
    %761 = vmatmul.mubr.bf16.gmra.mxu0 %v114
    %v762 = vpop.f32.mrf.mxu0
    %v763 = vadd.f32 %v51, %v762
    %v764 = vpop.f32.mrf.mxu0
    %v765 = vadd.f32 %v51, %v764
    %v766 = vpop.f32.mrf.mxu0
    %v767 = vadd.f32 %v56, %v766
    %v768 = vpop.f32.mrf.mxu0
    %v769 = vadd.f32 %v56, %v768
    %770 = vmatprep.mubr.bf16.mxu0 0
    %771 = vmatmul.mubr.bf16.gmra.mxu0 %v117
    %v772 = vpop.f32.mrf.mxu0
    %v773 = vadd.f32 %v61, %v772
    %v774 = vpop.f32.mrf.mxu0
    %v775 = vadd.f32 %v61, %v774
    %v776 = vpop.f32.mrf.mxu0
    %v777 = vadd.f32 %v66, %v776
    %v778 = vpop.f32.mrf.mxu0
    %v779 = vadd.f32 %v66, %v778
    %780 = vdwg.mxu0
    %v781 = vmax.f32 %v763, 0.0
    %v782 = vmax.f32 %v765, 0.0
    %v783 = vmax.f32 %v767, 0.0
    %v784 = vmax.f32 %v769, 0.0
    %v785 = vmax.f32 %v773, 0.0
    %v786 = vmax.f32 %v775, 0.0
    %v787 = vmax.f32 %v777, 0.0
    %v788 = vmax.f32 %v779, 0.0
    %v789 = vadd.f32 %v703, %v781
    %v790 = vadd.f32 %v704, %v782
    %v791 = vadd.f32 %v705, %v783
    %v792 = vadd.f32 %v706, %v784
    %v793 = vadd.f32 %v707, %v785
    %v794 = vadd.f32 %v708, %v786
    %v795 = vadd.f32 %v709, %v787
    %v796 = vadd.f32 %v710, %v788
    %s797 = scalar_lea.vmem [#allocation2], 128
    %v798 = vld [vmem:[%s797] sm:$0xff]
    %v799 = vld [vmem:[%s797 + $0x8] sm:$0x11]
    %v802 = vunpack.c.l.b16 %v798
    %v803 = vunpack.c.h.b16 %v798
    %v804 = vunpack.c.l.b16 %v799
    %v805 = vunpack.c.h.b16 %v799
    %v806 = vpack.c.b16 %v804, %v802
    %v807 = vpack.c.b16 %v805, %v803
    %v809 = vsel %vm119, %v806, 0
    %v812 = vsel %vm119, %v807, 0
    %814 = vmatprep.subr.bf16.mxu0 0
    %815 = vmatpush1.bf16.msra.mxu0 0
    %816 = vmatprep.subr.bf16.mxu0 0
    %817 = vmatpush1.bf16.msra.mxu0 0
    %818 = vmatprep.subr.bf16.mxu0 0
    %819 = vmatpush1.bf16.msra.mxu0 0
    %820 = vmatprep.subr.bf16.mxu0 0
    %821 = vmatpush1.bf16.msra.mxu0 0
    %822 = vmatprep.subr.bf16.mxu0 0
    %823 = vmatpush1.bf16.msra.mxu0 0
    %824 = vmatprep.subr.bf16.mxu0 0
    %825 = vmatpush1.bf16.msra.mxu0 0
    %826 = vmatprep.subr.bf16.mxu0 0
    %827 = vmatpush1.bf16.msra.mxu0 0
    %828 = vmatprep.subr.bf16.mxu0 %v812
    %829 = vmatpush1.bf16.msra.mxu0 %v809
    %830 = vmatprep.subr.bf16.mxu0 0
    %831 = vmatpush2.bf16.msra.mxu0 0
    %832 = vmatprep.subr.bf16.mxu0 0
    %833 = vmatpush2.bf16.msra.mxu0 0
    %834 = vmatprep.subr.bf16.mxu0 0
    %835 = vmatpush2.bf16.msra.mxu0 0
    %836 = vmatprep.subr.bf16.mxu0 0
    %837 = vmatpush2.bf16.msra.mxu0 0
    %838 = vmatprep.subr.bf16.mxu0 0
    %839 = vmatpush2.bf16.msra.mxu0 0
    %840 = vmatprep.subr.bf16.mxu0 0
    %841 = vmatpush2.bf16.msra.mxu0 0
    %842 = vmatprep.subr.bf16.mxu0 0
    %843 = vmatpush2.bf16.msra.mxu0 0
    %844 = vmatprep.subr.bf16.mxu0 0
    %845 = vmatpush2.bf16.msra.mxu0 0
    %846 = vmatprep.mubr.bf16.mxu0 0
    %847 = vmatmul.mubr.bf16.gmra.mxu0 %v114
    %v848 = vpop.f32.mrf.mxu0
    %v849 = vadd.f32 %v51, %v848
    %v850 = vpop.f32.mrf.mxu0
    %v851 = vadd.f32 %v51, %v850
    %v852 = vpop.f32.mrf.mxu0
    %v853 = vadd.f32 %v56, %v852
    %v854 = vpop.f32.mrf.mxu0
    %v855 = vadd.f32 %v56, %v854
    %856 = vmatprep.mubr.bf16.mxu0 0
    %857 = vmatmul.mubr.bf16.gmra.mxu0 %v117
    %v858 = vpop.f32.mrf.mxu0
    %v859 = vadd.f32 %v61, %v858
    %v860 = vpop.f32.mrf.mxu0
    %v861 = vadd.f32 %v61, %v860
    %v862 = vpop.f32.mrf.mxu0
    %v863 = vadd.f32 %v66, %v862
    %v864 = vpop.f32.mrf.mxu0
    %v865 = vadd.f32 %v66, %v864
    %866 = vdwg.mxu0
    %v867 = vmax.f32 %v849, 0.0
    %v868 = vmax.f32 %v851, 0.0
    %v869 = vmax.f32 %v853, 0.0
    %v870 = vmax.f32 %v855, 0.0
    %v871 = vmax.f32 %v859, 0.0
    %v872 = vmax.f32 %v861, 0.0
    %v873 = vmax.f32 %v863, 0.0
    %v874 = vmax.f32 %v865, 0.0
    %v875 = vadd.f32 %v789, %v867
    %v876 = vadd.f32 %v790, %v868
    %v877 = vadd.f32 %v791, %v869
    %v878 = vadd.f32 %v792, %v870
    %v879 = vadd.f32 %v793, %v871
    %v880 = vadd.f32 %v794, %v872
    %v881 = vadd.f32 %v795, %v873
    %v882 = vadd.f32 %v796, %v874
    %v883 = vpack.c.bf16 %v877, %v875
    %v884 = vpack.c.bf16 %v878, %v876
    %v885 = vpack.c.bf16 %v881, %v879
    %v886 = vpack.c.bf16 %v882, %v880
    %v891 = vunpack.c.l.b16 %v40
    %v892 = vunpack.c.l.b16 %v41
    %v893 = vunpack.c.l.b16 %v42
    %v894 = vunpack.c.l.b16 %v43
    %v895 = vpack.c.b16 %v892, %v891
    %v896 = vpack.c.b16 %v894, %v893
    %vm897 = vcmask 261120
    %v899 = vsel %vm897, %v895, 0
    %v902 = vsel %vm897, %v896, 0
    %904 = vmatprep.subr.bf16.mxu0 0
    %905 = vmatpush1.bf16.msra.mxu0 0
    %906 = vmatprep.subr.bf16.mxu0 0
    %907 = vmatpush1.bf16.msra.mxu0 0
    %908 = vmatprep.subr.bf16.mxu0 0
    %909 = vmatpush1.bf16.msra.mxu0 0
    %910 = vmatprep.subr.bf16.mxu0 0
    %911 = vmatpush1.bf16.msra.mxu0 0
    %912 = vmatprep.subr.bf16.mxu0 0
    %913 = vmatpush1.bf16.msra.mxu0 0
    %914 = vmatprep.subr.bf16.mxu0 0
    %915 = vmatpush1.bf16.msra.mxu0 0
    %916 = vmatprep.subr.bf16.mxu0 %v886
    %917 = vmatpush1.bf16.msra.mxu0 %v885
    %918 = vmatprep.subr.bf16.mxu0 %v884
    %919 = vmatpush1.bf16.msra.mxu0 %v883
    %920 = vmatprep.subr.bf16.mxu0 0
    %921 = vmatpush2.bf16.msra.mxu0 0
    %922 = vmatprep.subr.bf16.mxu0 0
    %923 = vmatpush2.bf16.msra.mxu0 0
    %924 = vmatprep.subr.bf16.mxu0 0
    %925 = vmatpush2.bf16.msra.mxu0 0
    %926 = vmatprep.subr.bf16.mxu0 0
    %927 = vmatpush2.bf16.msra.mxu0 0
    %928 = vmatprep.subr.bf16.mxu0 0
    %929 = vmatpush2.bf16.msra.mxu0 0
    %930 = vmatprep.subr.bf16.mxu0 0
    %931 = vmatpush2.bf16.msra.mxu0 0
    %932 = vmatprep.subr.bf16.mxu0 0
    %933 = vmatpush2.bf16.msra.mxu0 0
    %934 = vmatprep.subr.bf16.mxu0 0
    %935 = vmatpush2.bf16.msra.mxu0 0
    %936 = vmatprep.mubr.bf16.mxu0 0
    %937 = vmatmul.mubr.bf16.gmra.mxu0 %v899
    %v938 = vpop.f32.mrf.mxu0
    %v939 = vadd.f32 %v75, %v938
    %v940 = vpop.f32.mrf.mxu0
    %v941 = vadd.f32 %v75, %v940
    %v942 = vpop.f32.mrf.mxu0
    %v943 = vadd.f32 %v80, %v942
    %v944 = vpop.f32.mrf.mxu0
    %v945 = vadd.f32 %v80, %v944
    %946 = vmatprep.mubr.bf16.mxu0 0
    %947 = vmatmul.mubr.bf16.gmra.mxu0 %v902
    %v948 = vpop.f32.mrf.mxu0
    %v949 = vadd.f32 %v85, %v948
    %v950 = vpop.f32.mrf.mxu0
    %v951 = vadd.f32 %v85, %v950
    %v952 = vpop.f32.mrf.mxu0
    %v953 = vadd.f32 %v90, %v952
    %v954 = vpop.f32.mrf.mxu0
    %v955 = vadd.f32 %v90, %v954
    %956 = vdwg.mxu0
    %957 = vst [vmem:[#allocation5] sm:$0xff] %v939
    %958 = vst [vmem:[#allocation5 + $0x8] sm:$0xff] %v941
    %959 = vst [vmem:[#allocation5 + $0x10] sm:$0xff] %v943
    %960 = vst [vmem:[#allocation5 + $0x18] sm:$0xff] %v945
    %961 = vst [vmem:[#allocation5 + $0x20] sm:$0xff] %v949
    %962 = vst [vmem:[#allocation5 + $0x28] sm:$0xff] %v951
    %963 = vst [vmem:[#allocation5 + $0x30] sm:$0xff] %v953
    %964 = vst [vmem:[#allocation5 + $0x38] sm:$0xff] %v955
    // Predicated region
    $region26: #{tpu_custom_call.1} parent=1 // pred_check
      _
    $region27: #{tpu_custom_call.1} parent=1 // pred_check_branch
      %966 = sbr.rel (0) target = $region29
    $region28: #{tpu_custom_call.1} parent=1 // pred_region
      %s968 = ssub.s32 1024, 1024
      %969 = vsyncadd [#allocation4], %s968
      %s970 = sshll.u32 [#allocation5], 4
      %s971 = int_to_ptr.vmem [resolvable:$true] %s970
      %976 = dma.vmem_to_hbm [thread:$0]  %s971, 1024, %s5, [#allocation4], 256, 256, 16
    $region29: #{tpu_custom_call.1} parent=1 // pred_fallthru
      _
    // Predicated region
    $region30: #{tpu_custom_call.1} parent=1 // pred_check
      _
    $region31: #{tpu_custom_call.1} parent=1 // pred_check_branch
      %978 = sbr.rel (0) target = $region33
    $region32: #{tpu_custom_call.1} parent=1 // pred_region
      %979 = dma.done [#allocation4], 1024
    $region33: #{tpu_custom_call.1} parent=1 // pred_fallthru
      _
    %980 = vsyncpa [#allocation3], 1
    %981 = vsyncpa [#allocation4], 1

</llo_original>
